<compile_context>
chip_gen: v5e
topology: v5e:2x2
jax: 0.10.0
libtpu: 0.0.40
codegen_flags: <defaults>
</compile_context>

<pallas_src>
import functools

import numpy as np
import jax
import jax.numpy as jnp
from jax import lax
from jax.experimental import pallas as pl
from jax.experimental.pallas import tpu as pltpu


HP = 128  # lane-dense padded hidden width (real hidden H lives in cols [:H])


def _pick_tile(n):
    # Prefer bigger tiles (amortize ~0.35us/step, better MXU cadence on
    # v6e/v7x 256-deep MXUs) but keep padding overhead small for tiny graphs.
    # Tiles <=512 keep the propagation kernel's scoped VMEM ~2 MiB, which is
    # safe on v7x's 64 MiB physical VMEM.
    for t in (512, 256, 128):
        if n % t == 0 or n >= 2 * t:
            return t
    return 128


# ---------------------------------------------------------------------------
# Kernel 1: row projection  P = dinv * (X @ W)   (one pass over N, out of the
# propagation grid — this is the main perf fix from the review)
# ---------------------------------------------------------------------------
def _project_kernel(x_ref, w_ref, dinv_ref, out_ref):
    p = jnp.dot(x_ref[...].astype(jnp.bfloat16), w_ref[...],
                preferred_element_type=jnp.float32)
    out_ref[...] = (p * dinv_ref[...]).astype(out_ref.dtype)


def project_rows(x, w_bf16, dinv, *, tm):
    Np, F = x.shape
    Hp = w_bf16.shape[1]
    return pl.pallas_call(
        _project_kernel,
        out_shape=jax.ShapeDtypeStruct((Np, Hp), jnp.bfloat16),
        grid_spec=pltpu.PrefetchScalarGridSpec(
            num_scalar_prefetch=0,
            grid=(Np // tm,),
            in_specs=[
                pl.BlockSpec((tm, F), lambda i: (i, 0)),   # X / H_in tile
                pl.BlockSpec((F, Hp), lambda i: (0, 0)),   # W (resident)
                pl.BlockSpec((tm, 1), lambda i: (i, 0)),   # dinv rows
            ],
            out_specs=pl.BlockSpec((tm, Hp), lambda i: (i, 0)),
        ),
        compiler_params=pltpu.CompilerParams(
            dimension_semantics=("parallel",)),
        cost_estimate=pl.CostEstimate(
            flops=int(2 * Np * F * Hp), transcendentals=0,
            bytes_accessed=int(Np * F * np.dtype(x.dtype).itemsize
                               + F * Hp * 2 + Np * Hp * 2)),
    )(x, w_bf16, dinv)


# ---------------------------------------------------------------------------
# Kernel 2: propagation  out = finalize(dinv_i * (A_hat @ P)[i] + b)
# A_hat = A + I is never built: the self-loop is fused at the diagonal tile.
# ---------------------------------------------------------------------------
def _propagate_kernel(a_ref, p_ref, dinv_ref, b_ref, out_ref, acc_ref, *,
                      finalize):
    i = pl.program_id(0)
    k = pl.program_id(1)

    @pl.when(k == 0)
    def _init():
        acc_ref[...] = jnp.zeros_like(acc_ref)

    # acc += A[i-tile, k-tile] @ P[k-tile]   (bf16 MXU, f32 accumulate)
    acc_ref[...] += jnp.dot(a_ref[...].astype(jnp.bfloat16), p_ref[...],
                            preferred_element_type=jnp.float32)

    # fused self-loop (A_hat = A + I); requires tm == tk so the k-tile rows
    # coincide with the i-tile rows on the diagonal step.
    @pl.when(k == i)
    def _self_loop():
        acc_ref[...] += p_ref[...].astype(jnp.float32)

    @pl.when(k == pl.num_programs(1) - 1)
    def _finalize():
        h = acc_ref[...] * dinv_ref[...] + b_ref[...]
        if finalize == "relu":
            out_ref[...] = jnp.maximum(h, 0.0).astype(out_ref.dtype)
        else:  # "l2norm": F.normalize(dim=-1), rsqrt on the EUP
            ssq = jnp.sum(h * h, axis=-1, keepdims=True)
            inv_norm = lax.rsqrt(jnp.maximum(ssq, jnp.float32(1e-24)))
            out_ref[...] = (h * inv_norm).astype(out_ref.dtype)


def propagate(adj, p_scaled, dinv, b, *, finalize, out_dtype, tm):
    Np = adj.shape[0]
    Hp = p_scaled.shape[1]
    tk = tm  # must equal tm for the fused diagonal self-loop
    grid = (Np // tm, Np // tk)

    a_bytes = np.dtype(adj.dtype).itemsize
    flops = 2 * Np * Np * Hp + Np * Hp
    bytes_accessed = (Np * Np * a_bytes
                      + (Np // tm) * Np * Hp * 2
                      + Np * Hp * np.dtype(out_dtype).itemsize)

    return pl.pallas_call(
        functools.partial(_propagate_kernel, finalize=finalize),
        out_shape=jax.ShapeDtypeStruct((Np, Hp), out_dtype),
        grid_spec=pltpu.PrefetchScalarGridSpec(
            num_scalar_prefetch=0,
            grid=grid,
            in_specs=[
                pl.BlockSpec((tm, tk), lambda i, k: (i, k)),   # A tile
                pl.BlockSpec((tk, Hp), lambda i, k: (k, 0)),   # P (k side)
                pl.BlockSpec((tm, 1), lambda i, k: (i, 0)),    # dinv (i side)
                pl.BlockSpec((1, Hp), lambda i, k: (0, 0)),    # bias (resident)
            ],
            out_specs=pl.BlockSpec((tm, Hp), lambda i, k: (i, 0)),
            scratch_shapes=[pltpu.VMEM((tm, Hp), jnp.float32)],
        ),
        compiler_params=pltpu.CompilerParams(
            dimension_semantics=("parallel", "arbitrary"),
            vmem_limit_bytes=32 * 1024 * 1024,
        ),
        cost_estimate=pl.CostEstimate(
            flops=int(flops), transcendentals=0,
            bytes_accessed=int(bytes_accessed)),
    )(adj, p_scaled, dinv, b)


# ---------------------------------------------------------------------------
# Kernel 3: tiled masked SSE of per-edge dot products (VPU/XLU only, resident
# (1,1) accumulator — no f32 MXU matvecs, no un-blocked full-VMEM operands)
# ---------------------------------------------------------------------------
def _edge_loss_kernel(x0_ref, x1_ref, m_ref, t_ref, out_ref):
    @pl.when(pl.program_id(0) == 0)
    def _init():
        out_ref[...] = jnp.zeros_like(out_ref)

    dot = jnp.sum(x0_ref[...] * x1_ref[...], axis=-1, keepdims=True)   # [TE,1]
    err = m_ref[...] * (dot - t_ref[...]) ** 2
    out_ref[...] += jnp.sum(err, axis=0, keepdims=True)


def edge_dot_sse(x0, x1, mask_col, tgt_col, *, te):
    Ep, Hp = x0.shape
    out = pl.pallas_call(
        _edge_loss_kernel,
        out_shape=jax.ShapeDtypeStruct((1, 1), jnp.float32),
        grid_spec=pltpu.PrefetchScalarGridSpec(
            num_scalar_prefetch=0,
            grid=(Ep // te,),
            in_specs=[
                pl.BlockSpec((te, Hp), lambda e: (e, 0)),
                pl.BlockSpec((te, Hp), lambda e: (e, 0)),
                pl.BlockSpec((te, 1), lambda e: (e, 0)),
                pl.BlockSpec((te, 1), lambda e: (e, 0)),
            ],
            out_specs=pl.BlockSpec((1, 1), lambda e: (0, 0)),
        ),
        compiler_params=pltpu.CompilerParams(
            dimension_semantics=("arbitrary",)),
    )(x0, x1, mask_col, tgt_col)
    return out[0, 0]


# ---------------------------------------------------------------------------
# Forward wrapper (mirrors EstimateAdj.forward(features, adj))
# ---------------------------------------------------------------------------
def estimate_adj_forward(features, edge_index, adj_dense, params, n_neg, neg_key):
    """features: [N, F_in] f32; edge_index: [2, E] i32; adj_dense: [N, N] 0/1."""
    N, f_in = features.shape
    w1, b1, w2, b2 = params
    H = w2.shape[1]

    # Lane-dense 128-wide padded weights/biases (real H lives in cols [:H]).
    w1p = jnp.zeros((f_in, HP), jnp.bfloat16).at[:, :H].set(w1.astype(jnp.bfloat16))
    b1p = jnp.zeros((1, HP), jnp.float32).at[:, :H].set(b1.reshape(1, -1))
    w2p = jnp.zeros((HP, HP), jnp.bfloat16).at[:H, :H].set(w2.astype(jnp.bfloat16))
    b2p = jnp.zeros((1, HP), jnp.float32).at[:, :H].set(b2.reshape(1, -1))

    # D_hat^{-1/2} from edge counts (+1 self-loop). No dense A+I, no normalized
    # adjacency and no extra bf16 copy of A is ever materialized — the D^-1/2
    # scaling and the self-loop are fused inside the kernels.
    deg = jnp.zeros((N,), jnp.float32).at[edge_index[0]].add(1.0)
    dinv = lax.rsqrt(deg + 1.0).reshape(N, 1)

    # Node-dim tiling with padding to a tile multiple (never whole-axis blocks).
    tm = _pick_tile(N)
    Np = ((N + tm - 1) // tm) * tm
    pad_n = Np - N
    adj_p, x_p, dinv_p = adj_dense, features, dinv
    if pad_n:
        adj_p = jnp.pad(adj_dense, ((0, pad_n), (0, pad_n)))
        x_p = jnp.pad(features, ((0, pad_n), (0, 0)))
        dinv_p = jnp.pad(dinv, ((0, pad_n), (0, 0)), constant_values=1.0)

    # Layer 1: P1 = dinv*(X@W1) once, then H1 = relu(dinv*(A_hat@P1) + b1)
    p1 = project_rows(x_p, w1p, dinv_p, tm=tm)
    h1 = propagate(adj_p, p1, dinv_p, b1p, finalize="relu",
                   out_dtype=jnp.bfloat16, tm=tm)
    # Layer 2: P2 = dinv*(H1@W2) once, then L2-row-normalized output.
    p2 = project_rows(h1, w2p, dinv_p, tm=tm)
    reps_full = propagate(adj_p, p2, dinv_p, b2p, finalize="l2norm",
                          out_dtype=jnp.float32, tm=tm)
    reps_p = reps_full[:N]                     # drop padded rows
    reps = reps_p[:, :H]                       # module's representations [N, H]

    # --- reconstruct_loss ---------------------------------------------------
    # TODO(synk): torch_geometric utils.negative_sampling is stochastic and
    # rejection-excludes existing edges; approximated with a uniform draw + mask.
    num_neg = n_neg * N
    randn = jax.random.randint(neg_key, (2, num_neg), 0, N)
    neg_keep = (randn[0] < randn[1]) & (adj_dense[randn[0], randn[1]] == 0)
    pos_keep = edge_index[0] < edge_index[1]

    src = jnp.concatenate([edge_index[0], randn[0]]).astype(jnp.int32)
    dst = jnp.concatenate([edge_index[1], randn[1]]).astype(jnp.int32)
    mask = jnp.concatenate([pos_keep, neg_keep]).astype(jnp.float32)
    tgt = jnp.concatenate([jnp.ones((edge_index.shape[1],), jnp.float32),
                           jnp.zeros((num_neg,), jnp.float32)])

    TE = 256  # edges per grid step in the loss kernel
    e_tot = src.shape[0]
    e_pad = ((e_tot + TE - 1) // TE) * TE - e_tot
    if e_pad:
        src = jnp.pad(src, (0, e_pad))
        dst = jnp.pad(dst, (0, e_pad))
        mask = jnp.pad(mask, (0, e_pad))
        tgt = jnp.pad(tgt, (0, e_pad))

    # TODO(synk): move these row gathers inside the edge-loss kernel (scalar
    # prefetch + in-kernel DMA gather) to avoid the [E,128] HBM round trip.
    x0 = reps_p[src]
    x1 = reps_p[dst]

    sse = edge_dot_sse(x0, x1, mask[:, None], tgt[:, None], te=TE)
    denom = jnp.sum(mask)
    rec_loss = sse * jnp.float32(N) / denom
    return reps, rec_loss


# ---------------------------------------------------------------------------
# Main
# ---------------------------------------------------------------------------
if __name__ == "__main__":
    # conf.model: n_feat=32, edge_hidden=32, n_layer=2, n_neg=2
    # TODO(synk): norm_info / act / input_layer / output_layer options of the
    # referenced GCN are not modeled; plain 2-layer GCN with ReLU is used.
    N, F_IN, H, N_NEG = 384, 32, 32, 2   # N=384 -> 128x128 tiles, grid (3, 3)

    key = jax.random.PRNGKey(0)
    k_feat, k_w1, k_w2, k_neg = jax.random.split(key, 4)

    # synthetic ring graph, symmetric edges; adjacency built as bf16 up front
    # so no extra cast / A+I passes are needed before the kernel.
    src = jnp.arange(N, dtype=jnp.int32)
    dst = (src + 1) % N
    edge_index = jnp.concatenate(
        [jnp.stack([src, dst]), jnp.stack([dst, src])], axis=1)     # [2, 2N]
    adj_dense = jnp.zeros((N, N), jnp.bfloat16).at[
        edge_index[0], edge_index[1]].set(1.0)

    features = jax.random.normal(k_feat, (N, F_IN), dtype=jnp.float32)

    # deterministic parameter init (glorot-ish scaling)
    w1 = jax.random.normal(k_w1, (F_IN, H), jnp.float32) / jnp.sqrt(jnp.float32(F_IN))
    b1 = jnp.zeros((1, H), jnp.float32)
    w2 = jax.random.normal(k_w2, (H, H), jnp.float32) / jnp.sqrt(jnp.float32(H))
    b2 = jnp.zeros((1, H), jnp.float32)

    reps, rec_loss = estimate_adj_forward(
        features, edge_index, adj_dense, (w1, b1, w2, b2), N_NEG, k_neg)
    jax.block_until_ready((reps, rec_loss))

    assert reps.shape == (N, H)
    assert rec_loss.shape == ()
    assert bool(jnp.isfinite(rec_loss))
    print("KERNEL_OK")
</pallas_src>

<mosaic_0001>
module attributes {stable_mosaic.version = 11 : i64} {
  func.func @_project_kernel(%arg0: i32, %arg1: memref<128x32xf32, #tpu.memory_space<vmem>>, %arg2: memref<32x128xbf16, #tpu.memory_space<vmem>>, %arg3: memref<128x1xf32, #tpu.memory_space<vmem>>, %arg4: memref<128x128xbf16, #tpu.memory_space<vmem>>) attributes {dimension_semantics = [#tpu.dimension_semantics<parallel>], iteration_bounds = array<i64: 3>, scalar_prefetch = 0 : i64, scratch_operands = 0 : i64, tpu.core_type = #tpu.core_type<tc>, window_params = [{transform_indices = @transform_0, window_bounds = array<i64: 128, 32>}, {pipeline_mode = #tpu.pipeline_mode<synchronous>, transform_indices = @transform_1, window_bounds = array<i64: 32, 128>}, {transform_indices = @transform_2, window_bounds = array<i64: 128, 1>}, {transform_indices = @transform_3, window_bounds = array<i64: 128, 128>}]} {
    %c0 = arith.constant 0 : index
    %c0_0 = arith.constant 0 : index
    %0 = vector.load %arg1[%c0, %c0_0] : memref<128x32xf32, #tpu.memory_space<vmem>>, vector<128x32xf32>
    %1 = arith.truncf %0 : vector<128x32xf32> to vector<128x32xbf16>
    %c0_1 = arith.constant 0 : index
    %c0_2 = arith.constant 0 : index
    %2 = vector.load %arg2[%c0_1, %c0_2] : memref<32x128xbf16, #tpu.memory_space<vmem>>, vector<32x128xbf16>
    %cst = arith.constant dense<0.000000e+00> : vector<128x128xf32>
    %3 = tpu.matmul %1, %2, %cst {dimension_numbers = #tpu.dot_dimension_numbers<[1], [0], [0], [1], [0, 0, 1, 1], [], []>} : vector<128x32xbf16>, vector<32x128xbf16>, vector<128x128xf32> -> vector<128x128xf32>
    %c0_3 = arith.constant 0 : index
    %c0_4 = arith.constant 0 : index
    %4 = vector.load %arg3[%c0_3, %c0_4] : memref<128x1xf32, #tpu.memory_space<vmem>>, vector<128x1xf32>
    %5 = vector.broadcast %4 : vector<128x1xf32> to vector<128x128xf32>
    %6 = arith.mulf %3, %5 : vector<128x128xf32>
    %7 = arith.truncf %6 : vector<128x128xf32> to vector<128x128xbf16>
    %c0_5 = arith.constant 0 : index
    %c0_6 = arith.constant 0 : index
    %8 = vector.load %arg4[%c0_5, %c0_6] : memref<128x128xbf16, #tpu.memory_space<vmem>>, vector<128x128xbf16>
    tpu.vector_store %arg4[%c0_5, %c0_6], %7 {strides = array<i32>} : memref<128x128xbf16, #tpu.memory_space<vmem>>, vector<128x128xbf16>,
    return
  }
  func.func @transform_0(%arg0: i32) -> (i32, i32) {
    %c0_i32 = arith.constant 0 : i32
    %c0_i32_0 = arith.constant 0 : i32
    return %arg0, %c0_i32 : i32, i32
  }
  func.func @transform_1(%arg0: i32) -> (i32, i32) {
    %c0_i32 = arith.constant 0 : i32
    %c0_i32_0 = arith.constant 0 : i32
    %c0_i32_1 = arith.constant 0 : i32
    return %c0_i32, %c0_i32_0 : i32, i32
  }
  func.func @transform_2(%arg0: i32) -> (i32, i32) {
    %c0_i32 = arith.constant 0 : i32
    %c0_i32_0 = arith.constant 0 : i32
    return %arg0, %c0_i32 : i32, i32
  }
  func.func @transform_3(%arg0: i32) -> (i32, i32) {
    %c0_i32 = arith.constant 0 : i32
    %c0_i32_0 = arith.constant 0 : i32
    return %arg0, %c0_i32 : i32, i32
  }
}

</mosaic_0001>

<llo_original>
// kernel: tpu_custom_call.1
$region0: #{tpu_custom_call.1}
  #allocation0 [shape = 'u32[]', space=smem, size = 0x4, offset = 0x4, fixed_abs, tag = 'smem constant byte address 0x4 - core index']
  #allocation1 [shape = 'u32[72,128]{1,0:T(1,128)}', space=vmem, size = 0x9000, scoped, tag = 'internal scratch']
  %s0 = inlined_call_operand.vmem [shape: f32[384,32], index: 0, kind: input, shape index: {}]
  %s1 = inlined_call_operand.vmem [shape: bf16[32,128], index: 1, kind: input, shape index: {}]
  %s2 = inlined_call_operand.vmem [shape: f32[384,1], index: 2, kind: input, shape index: {}]
  %s3 = inlined_call_operand.hbm [shape: bf16[384,128], index: 3, kind: output, shape index: {}]
  %s4 = sld [smem:[#allocation0]]
  $region45: #{tpu_custom_call.1} parent=0
    _
  %s6 = ssub.s32 1, %s4
  %s7 = scalar_select 0, %s6, %s4
  $region1: #{tpu_custom_call.1} parent=0
    #allocation2 [shape = 'u8[65536]{0}', space=vmem, size = 0x10000, scoped, tag = 'output window, operand 0']
    #allocation3 [shape = 's32[2]{0}', space=sflag, size = 0x8, scoped, tag = 'scoped memory for tpu_custom_call.1']
    %8 = vsyncpa [#allocation3], 0
    %s9 = scalar_lea.sflag [#allocation3], 1
    %10 = vsyncpa %s9, 0
    loop: start=0, step=1, limit=5
    $region2: #{tpu_custom_call.1} parent=1 // loop_pre_header
      _
    $region3: #{tpu_custom_call.1} parent=1 // loop_header
      %s12 = sphi 0, %s16
      %p13 = scmp.ge.s32.totalorder %s12, 5
      %s22 = sphi 0, %s24
      %s25 = sphi 0, %s22
      %s26 = sphi 0, %s25
      %s42 = sphi 0, %s26
      %s46 = sphi 0, %s46
      %s48 = sphi 0, %s46
      %s49 = sphi 0, %s48
      %s63 = sphi 0, %s49
      %s69 = sphi 0, %s71
      %s72 = sphi 0, %s69
      %s73 = sphi 0, %s72
      %s89 = sphi 0, %s73
      %s95 = sphi 0, %s97
      %s98 = sphi 0, %s95
      %s99 = sphi 0, %s98
      %s115 = sphi 0, %s99
    $region4: #{tpu_custom_call.1} parent=1 // loop_header_branch
      %15 = sbr.rel (%p13) target = $region8
    $region5: #{tpu_custom_call.1} parent=1 // loop_body
      %s17 = ssub.s32 %s12, 1
      %s18 = ssub.s32 %s12, 2
      %s19 = sadd.s32 %s12, 1
      %s20 = ssub.s32 %s12, %s19
      %p21 = scmp.eq.s32.totalorder %s20, 0
      %s23 = sadd.s32 %s22, 1
      %s24 = scalar_select %p21, %s22, %s23
      %p27 = pneg %p21
      %p28 = scmp.eq.s32.totalorder %s12, 2
      %p29 = por %p27, %p28
      %p30 = scmp.ne.s32.totalorder %s22, %s25
      %p31 = scmp.eq.s32.totalorder %s12, 0
      %p32 = por %p30, %p31
      %p33 = scmp.ne.s32.totalorder %s22, %s25
      %p34 = scmp.eq.s32.totalorder %s17, 2
      %p35 = por %p33, %p34
      %p36 = scmp.ne.s32.totalorder %s25, %s26
      %p37 = scmp.eq.s32.totalorder %s17, 0
      %p38 = por %p36, %p37
      %p39 = scmp.ne.s32.totalorder %s25, %s26
      %p40 = scmp.eq.s32.totalorder %s18, 2
      %p41 = por %p39, %p40
      %p43 = scmp.ne.s32.totalorder %s26, %s42
      %p44 = scmp.eq.s32.totalorder %s18, 0
      %p45 = por %p43, %p44
      %s47 = sadd.s32 %s46, 1
      %p50 = scmp.eq.s32.totalorder %s12, 2
      %p51 = scmp.ne.s32.totalorder %s46, %s48
      %p52 = scmp.eq.s32.totalorder %s12, 0
      %p53 = por %p51, %p52
      %p54 = scmp.ne.s32.totalorder %s46, %s48
      %p55 = scmp.eq.s32.totalorder %s17, 2
      %p56 = por %p54, %p55
      %p57 = scmp.ne.s32.totalorder %s48, %s49
      %p58 = scmp.eq.s32.totalorder %s17, 0
      %p59 = por %p57, %p58
      %p60 = scmp.ne.s32.totalorder %s48, %s49
      %p61 = scmp.eq.s32.totalorder %s18, 2
      %p62 = por %p60, %p61
      %p64 = scmp.ne.s32.totalorder %s49, %s63
      %p65 = scmp.eq.s32.totalorder %s18, 0
      %p66 = por %p64, %p65
      %s67 = ssub.s32 %s12, %s19
      %p68 = scmp.eq.s32.totalorder %s67, 0
      %s70 = sadd.s32 %s69, 1
      %s71 = scalar_select %p68, %s69, %s70
      %p74 = pneg %p68
      %p75 = scmp.eq.s32.totalorder %s12, 2
      %p76 = por %p74, %p75
      %p77 = scmp.ne.s32.totalorder %s69, %s72
      %p78 = scmp.eq.s32.totalorder %s12, 0
      %p79 = por %p77, %p78
      %p80 = scmp.ne.s32.totalorder %s69, %s72
      %p81 = scmp.eq.s32.totalorder %s17, 2
      %p82 = por %p80, %p81
      %p83 = scmp.ne.s32.totalorder %s72, %s73
      %p84 = scmp.eq.s32.totalorder %s17, 0
      %p85 = por %p83, %p84
      %p86 = scmp.ne.s32.totalorder %s72, %s73
      %p87 = scmp.eq.s32.totalorder %s18, 2
      %p88 = por %p86, %p87
      %p90 = scmp.ne.s32.totalorder %s73, %s89
      %p91 = scmp.eq.s32.totalorder %s18, 0
      %p92 = por %p90, %p91
      %s93 = ssub.s32 %s12, %s19
      %p94 = scmp.eq.s32.totalorder %s93, 0
      %s96 = sadd.s32 %s95, 1
      %s97 = scalar_select %p94, %s95, %s96
      %p100 = pneg %p94
      %p101 = scmp.eq.s32.totalorder %s12, 2
      %p102 = por %p100, %p101
      %p103 = scmp.ne.s32.totalorder %s95, %s98
      %p104 = scmp.eq.s32.totalorder %s12, 0
      %p105 = por %p103, %p104
      %p106 = scmp.ne.s32.totalorder %s95, %s98
      %p107 = scmp.eq.s32.totalorder %s17, 2
      %p108 = por %p106, %p107
      %p109 = scmp.ne.s32.totalorder %s98, %s99
      %p110 = scmp.eq.s32.totalorder %s17, 0
      %p111 = por %p109, %p110
      %p112 = scmp.ne.s32.totalorder %s98, %s99
      %p113 = scmp.eq.s32.totalorder %s18, 2
      %p114 = por %p112, %p113
      %p116 = scmp.ne.s32.totalorder %s99, %s115
      %p117 = scmp.eq.s32.totalorder %s18, 0
      %p118 = por %p116, %p117
      %p119 = scmp.le.s32.totalorder 1, %s12
      %p120 = scmp.lt.s32.totalorder %s12, 4
      %p121 = pnand %p119, %p120
      %p122 = pneg %p121
      // Predicated region
      $region9: #{tpu_custom_call.1} parent=5 // pred_check
        _
      $region10: #{tpu_custom_call.1} parent=5 // pred_check_branch
        %124 = sbr.rel (%p121) target = $region12
      $region11: #{tpu_custom_call.1} parent=5 // pred_region
        %s125 = ssub.s32 %s12, 1
        // Predicated region
        $region13: #{tpu_custom_call.1} parent=11 // pred_check
          %p126 = pneg %p59
        $region14: #{tpu_custom_call.1} parent=11 // pred_check_branch
          %128 = sbr.rel (%p126) target = $region16
        $region15: #{tpu_custom_call.1} parent=11 // pred_region
          _
        $region16: #{tpu_custom_call.1} parent=11 // pred_fallthru
          _
      $region12: #{tpu_custom_call.1} parent=5 // pred_fallthru
        _
      %p129 = scmp.lt.s32.totalorder %s12, 3
      // Predicated region
      $region17: #{tpu_custom_call.1} parent=5 // pred_check
        %p130 = pneg %p129
      $region18: #{tpu_custom_call.1} parent=5 // pred_check_branch
        %132 = sbr.rel (%p130) target = $region20
      $region19: #{tpu_custom_call.1} parent=5 // pred_region
        // Predicated region
        $region21: #{tpu_custom_call.1} parent=19 // pred_check
          %p133 = pneg %p32
        $region22: #{tpu_custom_call.1} parent=19 // pred_check_branch
          %135 = sbr.rel (%p133) target = $region24
        $region23: #{tpu_custom_call.1} parent=19 // pred_region
          %s136 = smul.u32 16, %s12
          %p137 = scmp.lt.s32.totalorder %s136, 47
          %s138 = scalar_select %p137, %s136, 47
          %s139 = smul.addr %s138, 8
          %s140 = scalar_lea.vmem %s0, %s139
          %s141 = smul.u32 16, %s12
        $region24: #{tpu_custom_call.1} parent=19 // pred_fallthru
          _
        // Predicated region
        $region25: #{tpu_custom_call.1} parent=19 // pred_check
          %p142 = pneg %p79
        $region26: #{tpu_custom_call.1} parent=19 // pred_check_branch
          %144 = sbr.rel (%p142) target = $region28
        $region27: #{tpu_custom_call.1} parent=19 // pred_region
          %s145 = smul.u32 16, %s12
          %p146 = scmp.lt.s32.totalorder %s145, 47
          %s147 = scalar_select %p146, %s145, 47
          %s148 = smul.addr %s147, 8
          %s149 = scalar_lea.vmem %s2, %s148
          %s150 = smul.u32 16, %s12
        $region28: #{tpu_custom_call.1} parent=19 // pred_fallthru
          _
      $region20: #{tpu_custom_call.1} parent=5 // pred_fallthru
        _
      %p151 = scmp.le.s32.totalorder 1, %s12
      %p152 = scmp.lt.s32.totalorder %s12, 4
      %p153 = pnand %p151, %p152
      %p154 = pneg %p153
      // Predicated region
      $region29: #{tpu_custom_call.1} parent=5 // pred_check
        _
      $region30: #{tpu_custom_call.1} parent=5 // pred_check_branch
        %156 = sbr.rel (%p153) target = $region32
      $region31: #{tpu_custom_call.1} parent=5 // pred_region
        %s157 = ssub.s32 %s12, 1
        %s158 = smul.u32 16, %s17
        %p159 = scmp.lt.s32.totalorder %s158, 47
        %s160 = scalar_select %p159, %s158, 47
        %s161 = smul.addr %s160, 8
        %s162 = scalar_lea.vmem %s0, %s161
        %p163 = pneg %p38
        %p164 = pneg %p35
        %p165 = pneg %p59
        %p166 = pneg %p56
        %s167 = smul.u32 16, %s17
        %p168 = scmp.lt.s32.totalorder %s167, 47
        %s169 = scalar_select %p168, %s167, 47
        %s170 = smul.addr %s169, 8
        %s171 = scalar_lea.vmem %s2, %s170
        %p172 = pneg %p85
        %p173 = pneg %p82
        %p174 = pneg %p111
        %p175 = pneg %p108
        %s176 = sand.u32 %s98, 1
        %s177 = scalar_lea.sflag [#allocation3], %s176
        %s178 = sand.u32 %s98, 1
        %s179 = smul.addr %s178, 64
        %s180 = scalar_lea.vmem [#allocation2], %s179
        %s181 = smul.u32 16, %s17
        %p182 = scmp.lt.s32.totalorder %s181, 47
        %s183 = scalar_select %p182, %s181, 47
        %s184 = smul.addr %s183, 8
        %s185 = scalar_lea.vmem %s0, %s184
        %s186 = smul.u32 16, %s17
        %s187 = smul.u32 16, %s17
        %p188 = scmp.lt.s32.totalorder %s187, 47
        %s189 = scalar_select %p188, %s187, 47
        %s190 = smul.addr %s189, 8
        %s191 = scalar_lea.vmem %s2, %s190
        %s192 = smul.u32 16, %s17
        %s193 = smul.u32 16, %s17
        %v195 = vld [vmem:[%s185] sm:$0xff]
        %v196 = vld [vmem:[%s185 + $0x8] sm:$0xff]
        %v197 = vld [vmem:[%s185 + $0x10] sm:$0xff]
        %v198 = vld [vmem:[%s185 + $0x18] sm:$0xff]
        %v199 = vld [vmem:[%s185 + $0x20] sm:$0xff]
        %v200 = vld [vmem:[%s185 + $0x28] sm:$0xff]
        %v201 = vld [vmem:[%s185 + $0x30] sm:$0xff]
        %v202 = vld [vmem:[%s185 + $0x38] sm:$0xff]
        %v203 = vld [vmem:[%s185 + $0x40] sm:$0xff]
        %v204 = vld [vmem:[%s185 + $0x48] sm:$0xff]
        %v205 = vld [vmem:[%s185 + $0x50] sm:$0xff]
        %v206 = vld [vmem:[%s185 + $0x58] sm:$0xff]
        %v207 = vld [vmem:[%s185 + $0x60] sm:$0xff]
        %v208 = vld [vmem:[%s185 + $0x68] sm:$0xff]
        %v209 = vld [vmem:[%s185 + $0x70] sm:$0xff]
        %v210 = vld [vmem:[%s185 + $0x78] sm:$0xff]
        %v211 = vpack.c.bf16 %v196, %v195
        %v212 = vpack.c.bf16 %v198, %v197
        %v213 = vpack.c.bf16 %v200, %v199
        %v214 = vpack.c.bf16 %v202, %v201
        %v215 = vpack.c.bf16 %v204, %v203
        %v216 = vpack.c.bf16 %v206, %v205
        %v217 = vpack.c.bf16 %v208, %v207
        %v218 = vpack.c.bf16 %v210, %v209
        %v219 = vld [vmem:[%s1] sm:$0xf]
        %v220 = vld [vmem:[%s1 + $0x4] sm:$0xf]
        %v221 = vld [vmem:[%s1 + $0x8] sm:$0xf]
        %v222 = vld [vmem:[%s1 + $0xc] sm:$0xf]
        %v227 = vunpack.c.l.b16 %v219
        %v228 = vunpack.c.l.b16 %v220
        %v229 = vunpack.c.l.b16 %v221
        %v230 = vunpack.c.l.b16 %v222
        %v231 = vpack.c.b16 %v228, %v227
        %v232 = vpack.c.b16 %v230, %v229
        %vm235 = vcmask 261120
        %v237 = vsel %vm235, %v211, 0
        %v240 = vsel %vm235, %v212, 0
        %v243 = vsel %vm235, %v213, 0
        %v246 = vsel %vm235, %v214, 0
        %v249 = vsel %vm235, %v215, 0
        %v252 = vsel %vm235, %v216, 0
        %v255 = vsel %vm235, %v217, 0
        %v258 = vsel %vm235, %v218, 0
        %260 = vmatpush.bf16.msra.mxu0 0
        %261 = vmatpush.bf16.msra.mxu0 0
        %262 = vmatpush.bf16.msra.mxu0 0
        %263 = vmatpush.bf16.msra.mxu0 0
        %264 = vmatpush.bf16.msra.mxu0 0
        %265 = vmatpush.bf16.msra.mxu0 0
        %266 = vmatpush.bf16.msra.mxu0 %v232
        %267 = vmatpush.bf16.msra.mxu0 %v231
        %268 = vmatmul.bf16.gmra.mxu0 %v237
        %v269 = vpop.f32.mrf.mxu0
        %v270 = vadd.f32 0.0, %v269
        %v271 = vpop.f32.mrf.mxu0
        %v272 = vadd.f32 0.0, %v271
        %273 = vmatmul.bf16.gmra.mxu0 %v240
        %v274 = vpop.f32.mrf.mxu0
        %v275 = vadd.f32 0.0, %v274
        %v276 = vpop.f32.mrf.mxu0
        %v277 = vadd.f32 0.0, %v276
        %278 = vmatmul.bf16.gmra.mxu0 %v243
        %v279 = vpop.f32.mrf.mxu0
        %v280 = vadd.f32 0.0, %v279
        %v281 = vpop.f32.mrf.mxu0
        %v282 = vadd.f32 0.0, %v281
        %283 = vmatmul.bf16.gmra.mxu0 %v246
        %v284 = vpop.f32.mrf.mxu0
        %v285 = vadd.f32 0.0, %v284
        %v286 = vpop.f32.mrf.mxu0
        %v287 = vadd.f32 0.0, %v286
        %288 = vmatmul.bf16.gmra.mxu0 %v249
        %v289 = vpop.f32.mrf.mxu0
        %v290 = vadd.f32 0.0, %v289
        %v291 = vpop.f32.mrf.mxu0
        %v292 = vadd.f32 0.0, %v291
        %293 = vmatmul.bf16.gmra.mxu0 %v252
        %v294 = vpop.f32.mrf.mxu0
        %v295 = vadd.f32 0.0, %v294
        %v296 = vpop.f32.mrf.mxu0
        %v297 = vadd.f32 0.0, %v296
        %298 = vmatmul.bf16.gmra.mxu0 %v255
        %v299 = vpop.f32.mrf.mxu0
        %v300 = vadd.f32 0.0, %v299
        %v301 = vpop.f32.mrf.mxu0
        %v302 = vadd.f32 0.0, %v301
        %303 = vmatmul.bf16.gmra.mxu0 %v258
        %v304 = vpop.f32.mrf.mxu0
        %v305 = vadd.f32 0.0, %v304
        %v306 = vpop.f32.mrf.mxu0
        %v307 = vadd.f32 0.0, %v306
        %308 = vdwg.mxu0
        %v309 = vld [vmem:[%s191] sm:$0xff]
        %v310 = vld [vmem:[%s191 + $0x8] sm:$0xff]
        %v311 = vld [vmem:[%s191 + $0x10] sm:$0xff]
        %v312 = vld [vmem:[%s191 + $0x18] sm:$0xff]
        %v313 = vld [vmem:[%s191 + $0x20] sm:$0xff]
        %v314 = vld [vmem:[%s191 + $0x28] sm:$0xff]
        %v315 = vld [vmem:[%s191 + $0x30] sm:$0xff]
        %v316 = vld [vmem:[%s191 + $0x38] sm:$0xff]
        %v317 = vld [vmem:[%s191 + $0x40] sm:$0xff]
        %v318 = vld [vmem:[%s191 + $0x48] sm:$0xff]
        %v319 = vld [vmem:[%s191 + $0x50] sm:$0xff]
        %v320 = vld [vmem:[%s191 + $0x58] sm:$0xff]
        %v321 = vld [vmem:[%s191 + $0x60] sm:$0xff]
        %v322 = vld [vmem:[%s191 + $0x68] sm:$0xff]
        %v323 = vld [vmem:[%s191 + $0x70] sm:$0xff]
        %v324 = vld [vmem:[%s191 + $0x78] sm:$0xff]
        %326 = vset.pattern.permute.xlu0 0
        %327 = vperm.xlu0 %326, %v309
        %v328 = vpop.permute.xlu0 %327
        %331 = vset.pattern.permute.xlu0 0
        %332 = vperm.xlu0 %331, %v310
        %v333 = vpop.permute.xlu0 %332
        %336 = vset.pattern.permute.xlu0 0
        %337 = vperm.xlu0 %336, %v311
        %v338 = vpop.permute.xlu0 %337
        %341 = vset.pattern.permute.xlu0 0
        %342 = vperm.xlu0 %341, %v312
        %v343 = vpop.permute.xlu0 %342
        %346 = vset.pattern.permute.xlu0 0
        %347 = vperm.xlu0 %346, %v313
        %v348 = vpop.permute.xlu0 %347
        %351 = vset.pattern.permute.xlu0 0
        %352 = vperm.xlu0 %351, %v314
        %v353 = vpop.permute.xlu0 %352
        %356 = vset.pattern.permute.xlu0 0
        %357 = vperm.xlu0 %356, %v315
        %v358 = vpop.permute.xlu0 %357
        %361 = vset.pattern.permute.xlu0 0
        %362 = vperm.xlu0 %361, %v316
        %v363 = vpop.permute.xlu0 %362
        %366 = vset.pattern.permute.xlu0 0
        %367 = vperm.xlu0 %366, %v317
        %v368 = vpop.permute.xlu0 %367
        %371 = vset.pattern.permute.xlu0 0
        %372 = vperm.xlu0 %371, %v318
        %v373 = vpop.permute.xlu0 %372
        %376 = vset.pattern.permute.xlu0 0
        %377 = vperm.xlu0 %376, %v319
        %v378 = vpop.permute.xlu0 %377
        %381 = vset.pattern.permute.xlu0 0
        %382 = vperm.xlu0 %381, %v320
        %v383 = vpop.permute.xlu0 %382
        %386 = vset.pattern.permute.xlu0 0
        %387 = vperm.xlu0 %386, %v321
        %v388 = vpop.permute.xlu0 %387
        %391 = vset.pattern.permute.xlu0 0
        %392 = vperm.xlu0 %391, %v322
        %v393 = vpop.permute.xlu0 %392
        %396 = vset.pattern.permute.xlu0 0
        %397 = vperm.xlu0 %396, %v323
        %v398 = vpop.permute.xlu0 %397
        %401 = vset.pattern.permute.xlu0 0
        %402 = vperm.xlu0 %401, %v324
        %v403 = vpop.permute.xlu0 %402
        %v405 = vmul.f32 %v270, %v328
        %v406 = vmul.f32 %v272, %v333
        %v407 = vmul.f32 %v275, %v338
        %v408 = vmul.f32 %v277, %v343
        %v409 = vmul.f32 %v280, %v348
        %v410 = vmul.f32 %v282, %v353
        %v411 = vmul.f32 %v285, %v358
        %v412 = vmul.f32 %v287, %v363
        %v413 = vmul.f32 %v290, %v368
        %v414 = vmul.f32 %v292, %v373
        %v415 = vmul.f32 %v295, %v378
        %v416 = vmul.f32 %v297, %v383
        %v417 = vmul.f32 %v300, %v388
        %v418 = vmul.f32 %v302, %v393
        %v419 = vmul.f32 %v305, %v398
        %v420 = vmul.f32 %v307, %v403
        %v421 = vpack.c.bf16 %v405, %v405
        %v422 = vpack.c.bf16 %v406, %v406
        %v423 = vpack.c.bf16 %v407, %v407
        %v424 = vpack.c.bf16 %v408, %v408
        %v425 = vpack.c.bf16 %v409, %v409
        %v426 = vpack.c.bf16 %v410, %v410
        %v427 = vpack.c.bf16 %v411, %v411
        %v428 = vpack.c.bf16 %v412, %v412
        %v429 = vpack.c.bf16 %v413, %v413
        %v430 = vpack.c.bf16 %v414, %v414
        %v431 = vpack.c.bf16 %v415, %v415
        %v432 = vpack.c.bf16 %v416, %v416
        %v433 = vpack.c.bf16 %v417, %v417
        %v434 = vpack.c.bf16 %v418, %v418
        %v435 = vpack.c.bf16 %v419, %v419
        %v436 = vpack.c.bf16 %v420, %v420
        %437 = vst [vmem:[%s180] sm:$0xf] %v421
        %438 = vst [vmem:[%s180 + $0x4] sm:$0xf] %v422
        %439 = vst [vmem:[%s180 + $0x8] sm:$0xf] %v423
        %440 = vst [vmem:[%s180 + $0xc] sm:$0xf] %v424
        %441 = vst [vmem:[%s180 + $0x10] sm:$0xf] %v425
        %442 = vst [vmem:[%s180 + $0x14] sm:$0xf] %v426
        %443 = vst [vmem:[%s180 + $0x18] sm:$0xf] %v427
        %444 = vst [vmem:[%s180 + $0x1c] sm:$0xf] %v428
        %445 = vst [vmem:[%s180 + $0x20] sm:$0xf] %v429
        %446 = vst [vmem:[%s180 + $0x24] sm:$0xf] %v430
        %447 = vst [vmem:[%s180 + $0x28] sm:$0xf] %v431
        %448 = vst [vmem:[%s180 + $0x2c] sm:$0xf] %v432
        %449 = vst [vmem:[%s180 + $0x30] sm:$0xf] %v433
        %450 = vst [vmem:[%s180 + $0x34] sm:$0xf] %v434
        %451 = vst [vmem:[%s180 + $0x38] sm:$0xf] %v435
        %452 = vst [vmem:[%s180 + $0x3c] sm:$0xf] %v436
        %s453 = sand.u32 %s98, 1
        %s454 = scalar_lea.sflag [#allocation3], %s453
        %s455 = sand.u32 %s98, 1
        %s456 = smul.addr %s455, 64
        %s457 = scalar_lea.vmem [#allocation2], %s456
        // Predicated region
        $region33: #{tpu_custom_call.1} parent=31 // pred_check
          %p458 = pneg %p108
        $region34: #{tpu_custom_call.1} parent=31 // pred_check_branch
          %460 = sbr.rel (%p458) target = $region36
        $region35: #{tpu_custom_call.1} parent=31 // pred_region
          %s461 = smul.u32 16, %s17
          %463 = vsyncadd %s454, 0
          %s464 = smul.addr %s461, 4
          %s465 = scalar_lea.hbm %s3, %s464
          %s466 = sshll.u32 %s457, 4
          %s467 = int_to_ptr.vmem [resolvable:$true] %s466
          %s468 = sshll.u32 %s465, 4
          %s469 = int_to_ptr.hbm [resolvable:$true] %s468
          %474 = dma.vmem_to_hbm [thread:$0]  %s467, 1024, %s469, %s454, 64, 64, 4
        $region36: #{tpu_custom_call.1} parent=31 // pred_fallthru
          _
      $region32: #{tpu_custom_call.1} parent=5 // pred_fallthru
        _
      %p475 = scmp.le.s32.totalorder 2, %s12
      // Predicated region
      $region37: #{tpu_custom_call.1} parent=5 // pred_check
        %p476 = pneg %p475
      $region38: #{tpu_custom_call.1} parent=5 // pred_check_branch
        %478 = sbr.rel (%p476) target = $region40
      $region39: #{tpu_custom_call.1} parent=5 // pred_region
        %s479 = ssub.s32 %s12, 2
        // Predicated region
        $region41: #{tpu_custom_call.1} parent=39 // pred_check
          %p480 = pneg %p114
        $region42: #{tpu_custom_call.1} parent=39 // pred_check_branch
          %482 = sbr.rel (%p480) target = $region44
        $region43: #{tpu_custom_call.1} parent=39 // pred_region
          %s483 = sand.u32 %s99, 1
          %s484 = scalar_lea.sflag [#allocation3], %s483
          %s485 = sand.u32 %s99, 1
          %s486 = smul.addr %s485, 64
          %s487 = scalar_lea.vmem [#allocation2], %s486
          %489 = dma.done %s484, 1024
        $region44: #{tpu_custom_call.1} parent=39 // pred_fallthru
          _
      $region40: #{tpu_custom_call.1} parent=5 // pred_fallthru
        _
    $region6: #{tpu_custom_call.1} parent=1 // loop_footer
      %s16 = sadd.s32 1, %s12
    $region7: #{tpu_custom_call.1} parent=1 // loop_footer_branch
      %11 = sbr.rel target = $region3
    $region8: #{tpu_custom_call.1} parent=1 // loop_exit
      _
    %490 = vsyncpa [#allocation3], 1
    %s491 = scalar_lea.sflag [#allocation3], 1
    %492 = vsyncpa %s491, 1

</llo_original>
